<compile_context>
chip_gen: v7x
topology: tpu7x:2x2x1
jax: 0.10.0
libtpu: 0.0.40
codegen_flags: <defaults>
</compile_context>

<pallas_src>
import functools

import jax
import jax.numpy as jnp
from jax.experimental import pallas as pl
from jax.experimental.pallas import tpu as pltpu


def _round_up(x: int, m: int) -> int:
    return (x + m - 1) // m * m


def qnetwork_kernel(x_ref, w1_ref, b1_ref, w2_ref, b2_ref, w3_ref, b3_ref, out_ref):
    """One batch tile: fc1 (f32) -> ReLU -> fc2 -> ReLU -> fc3 (bf16 MXU ops, f32 acc)."""
    x = x_ref[...]                                                     # f32 (TM, S)
    h1 = jnp.dot(x, w1_ref[...], preferred_element_type=jnp.float32) + b1_ref[...]
    h1 = jnp.maximum(h1, 0.0)                                          # f32 VPU (v5e-safe)
    h2 = jnp.dot(h1.astype(jnp.bfloat16), w2_ref[...],
                 preferred_element_type=jnp.float32) + b2_ref[...]
    h2 = jnp.maximum(h2, 0.0)
    out = jnp.dot(h2.astype(jnp.bfloat16), w3_ref[...],
                  preferred_element_type=jnp.float32) + b3_ref[...]
    out_ref[...] = out.astype(out_ref.dtype)                           # lane-dense bf16 store


@functools.partial(jax.jit, static_argnames=("action_size", "tm_max"))
def qnetwork_forward(state, kparams, *, action_size, tm_max=1024):
    """state: [B, state_size] f32.  kparams: padded weights [in,out], biases [1,out]."""
    w1, b1 = kparams["w1"], kparams["b1"]
    w2, b2 = kparams["w2"], kparams["b2"]
    w3, b3 = kparams["w3"], kparams["b3"]

    B, S = state.shape
    H1 = w1.shape[1]
    H2 = w2.shape[1]
    A = w3.shape[1]  # lane-dense padded action dim (multiple of 128)

    # Only pad the batch to a sublane multiple of 8 (no feature padding, no cast).
    B_pad = _round_up(B, 8)
    x = state if B_pad == B else jnp.zeros((B_pad, S), state.dtype).at[:B].set(state)

    # Batch tile: cap at tm_max; if the whole batch fits in one tile, split it in
    # two so the "parallel" grid axis can shard across v7x's 2 TensorCores.
    if B_pad > tm_max:
        tm = tm_max
    elif B_pad >= 16:
        tm = _round_up(B_pad // 2, 8)
    else:
        tm = B_pad
    grid = (pl.cdiv(B_pad, tm),)  # partial last tile allowed (no full-tile batch padding)

    grid_spec = pltpu.PrefetchScalarGridSpec(
        num_scalar_prefetch=0,
        grid=grid,
        in_specs=[
            pl.BlockSpec((tm, S), lambda i: (i, 0)),    # state: tiled over batch
            pl.BlockSpec((S, H1), lambda i: (0, 0)),    # weights/biases: VMEM-resident
            pl.BlockSpec((1, H1), lambda i: (0, 0)),
            pl.BlockSpec((H1, H2), lambda i: (0, 0)),
            pl.BlockSpec((1, H2), lambda i: (0, 0)),
            pl.BlockSpec((H2, A), lambda i: (0, 0)),
            pl.BlockSpec((1, A), lambda i: (0, 0)),
        ],
        out_specs=pl.BlockSpec((tm, A), lambda i: (i, 0)),
    )

    out = pl.pallas_call(
        qnetwork_kernel,
        out_shape=jax.ShapeDtypeStruct((B_pad, A), jnp.bfloat16),   # bf16 halves writeback
        grid_spec=grid_spec,
        compiler_params=pltpu.CompilerParams(
            dimension_semantics=("parallel",),          # megacore split on v7x
        ),
    )(x, w1, b1, w2, b2, w3, b3)

    # Slice away padding; return f32 Q-values (module-forward semantics).
    return out[:B, :action_size].astype(jnp.float32)


def init_params(key, state_size, action_size, fc1_units=64, fc2_units=64):
    """Synthetic init mimicking nn.Linear default (uniform +/- 1/sqrt(fan_in)).

    Returns f32 reference params: W_t [in, out] (transposed from PyTorch [out, in]),
    biases [1, out].
    """
    ks = jax.random.split(key, 6)

    def lin(kw, kb, fan_in, fan_out):
        bound = 1.0 / jnp.sqrt(jnp.float32(fan_in))
        w_t = jax.random.uniform(kw, (fan_in, fan_out), jnp.float32, -bound, bound)
        b = jax.random.uniform(kb, (1, fan_out), jnp.float32, -bound, bound)
        return w_t, b

    w1, b1 = lin(ks[0], ks[1], state_size, fc1_units)
    w2, b2 = lin(ks[2], ks[3], fc1_units, fc2_units)
    w3, b3 = lin(ks[4], ks[5], fc2_units, action_size)
    return {"w1": w1, "b1": b1, "w2": w2, "b2": b2, "w3": w3, "b3": b3}


def pad_params_for_kernel(params):
    """Zero-pad hidden/action dims to lane multiples of 128.

    w1 stays f32 (first layer runs in f32, first dim = state_size, unpadded);
    w2/w3 become bf16 MXU operands; biases stay f32.
    """
    S = params["w1"].shape[0]
    H1 = _round_up(params["w1"].shape[1], 128)
    H2 = _round_up(params["w2"].shape[1], 128)
    A = _round_up(params["w3"].shape[1], 128)

    def pad(w, r, c, dtype):
        return jnp.zeros((r, c), dtype).at[: w.shape[0], : w.shape[1]].set(w.astype(dtype))

    return {
        "w1": pad(params["w1"], S, H1, jnp.float32),
        "b1": pad(params["b1"], 1, H1, jnp.float32),
        "w2": pad(params["w2"], H1, H2, jnp.bfloat16),
        "b2": pad(params["b2"], 1, H2, jnp.float32),
        "w3": pad(params["w3"], H2, A, jnp.bfloat16),
        "b3": pad(params["b3"], 1, A, jnp.float32),
    }


if __name__ == "__main__":
    key = jax.random.PRNGKey(0)
    k_state, k_params, k_state2 = jax.random.split(key, 3)

    # Small shapes consistent with the module's forward (MLP on [B, state_size]).
    B, state_size, action_size = 8, 8, 4
    fc1_units, fc2_units = 64, 64

    params = init_params(k_params, state_size, action_size, fc1_units, fc2_units)
    kparams = pad_params_for_kernel(params)

    def reference(x):
        # Same dtype path as the kernel: layer 1 f32, layers 2/3 bf16 operands, f32 acc.
        h1 = jnp.maximum(jnp.dot(x, params["w1"]) + params["b1"], 0.0)
        h2 = jnp.maximum(
            jnp.dot(h1.astype(jnp.bfloat16), params["w2"].astype(jnp.bfloat16),
                    preferred_element_type=jnp.float32) + params["b2"], 0.0)
        return jnp.dot(h2.astype(jnp.bfloat16), params["w3"].astype(jnp.bfloat16),
                       preferred_element_type=jnp.float32) + params["b3"]

    # Case 1: tiny batch, single tile.
    state = jax.random.normal(k_state, (B, state_size), jnp.float32)
    out = jax.block_until_ready(qnetwork_forward(state, kparams, action_size=action_size))
    assert out.shape == (B, action_size)
    assert jnp.allclose(out, reference(state), atol=2e-2, rtol=2e-2)

    # Case 2: batch that exercises the split grid (2 tiles) and a partial last tile.
    B2 = 40
    state2 = jax.random.normal(k_state2, (B2, state_size), jnp.float32)
    out2 = jax.block_until_ready(qnetwork_forward(state2, kparams, action_size=action_size))
    assert out2.shape == (B2, action_size)
    assert jnp.allclose(out2, reference(state2), atol=2e-2, rtol=2e-2)

    print("KERNEL_OK")
</pallas_src>

<mosaic_0001>
module attributes {stable_mosaic.version = 11 : i64} {
  func.func @qnetwork_kernel(%arg0: i32, %arg1: memref<8x8xf32, #tpu.memory_space<vmem>>, %arg2: memref<8x128xf32, #tpu.memory_space<vmem>>, %arg3: memref<1x128xf32, #tpu.memory_space<vmem>>, %arg4: memref<128x128xbf16, #tpu.memory_space<vmem>>, %arg5: memref<1x128xf32, #tpu.memory_space<vmem>>, %arg6: memref<128x128xbf16, #tpu.memory_space<vmem>>, %arg7: memref<1x128xf32, #tpu.memory_space<vmem>>, %arg8: memref<8x128xbf16, #tpu.memory_space<vmem>>) attributes {dimension_semantics = [#tpu.dimension_semantics<parallel>], iteration_bounds = array<i64: 1>, scalar_prefetch = 0 : i64, scratch_operands = 0 : i64, tpu.core_type = #tpu.core_type<tc>, window_params = [{transform_indices = @transform_0, window_bounds = array<i64: 8, 8>}, {pipeline_mode = #tpu.pipeline_mode<synchronous>, transform_indices = @transform_1, window_bounds = array<i64: 8, 128>}, {pipeline_mode = #tpu.pipeline_mode<synchronous>, transform_indices = @transform_2, window_bounds = array<i64: 1, 128>}, {pipeline_mode = #tpu.pipeline_mode<synchronous>, transform_indices = @transform_3, window_bounds = array<i64: 128, 128>}, {pipeline_mode = #tpu.pipeline_mode<synchronous>, transform_indices = @transform_4, window_bounds = array<i64: 1, 128>}, {pipeline_mode = #tpu.pipeline_mode<synchronous>, transform_indices = @transform_5, window_bounds = array<i64: 128, 128>}, {pipeline_mode = #tpu.pipeline_mode<synchronous>, transform_indices = @transform_6, window_bounds = array<i64: 1, 128>}, {transform_indices = @transform_7, window_bounds = array<i64: 8, 128>}]} {
    %c0 = arith.constant 0 : index
    %c0_0 = arith.constant 0 : index
    %0 = vector.load %arg1[%c0, %c0_0] : memref<8x8xf32, #tpu.memory_space<vmem>>, vector<8x8xf32>
    %c0_1 = arith.constant 0 : index
    %c0_2 = arith.constant 0 : index
    %1 = vector.load %arg2[%c0_1, %c0_2] : memref<8x128xf32, #tpu.memory_space<vmem>>, vector<8x128xf32>
    %cst = arith.constant dense<0.000000e+00> : vector<8x128xf32>
    %2 = tpu.matmul %0, %1, %cst {dimension_numbers = #tpu.dot_dimension_numbers<[1], [0], [0], [1], [0, 0, 1, 1], [], []>} : vector<8x8xf32>, vector<8x128xf32>, vector<8x128xf32> -> vector<8x128xf32>
    %c0_3 = arith.constant 0 : index
    %c0_4 = arith.constant 0 : index
    %3 = vector.load %arg3[%c0_3, %c0_4] : memref<1x128xf32, #tpu.memory_space<vmem>>, vector<1x128xf32>
    %4 = vector.broadcast %3 : vector<1x128xf32> to vector<8x128xf32>
    %5 = arith.addf %2, %4 : vector<8x128xf32>
    %cst_5 = arith.constant 0.000000e+00 : f32
    %6 = vector.broadcast %cst_5 : f32 to vector<8x128xf32>
    %7 = arith.maximumf %5, %6 : vector<8x128xf32>
    %8 = arith.truncf %7 : vector<8x128xf32> to vector<8x128xbf16>
    %c0_6 = arith.constant 0 : index
    %c0_7 = arith.constant 0 : index
    %9 = vector.load %arg4[%c0_6, %c0_7] : memref<128x128xbf16, #tpu.memory_space<vmem>>, vector<128x128xbf16>
    %cst_8 = arith.constant dense<0.000000e+00> : vector<8x128xf32>
    %10 = tpu.matmul %8, %9, %cst_8 {dimension_numbers = #tpu.dot_dimension_numbers<[1], [0], [0], [1], [0, 0, 1, 1], [], []>} : vector<8x128xbf16>, vector<128x128xbf16>, vector<8x128xf32> -> vector<8x128xf32>
    %c0_9 = arith.constant 0 : index
    %c0_10 = arith.constant 0 : index
    %11 = vector.load %arg5[%c0_9, %c0_10] : memref<1x128xf32, #tpu.memory_space<vmem>>, vector<1x128xf32>
    %12 = vector.broadcast %11 : vector<1x128xf32> to vector<8x128xf32>
    %13 = arith.addf %10, %12 : vector<8x128xf32>
    %cst_11 = arith.constant 0.000000e+00 : f32
    %14 = vector.broadcast %cst_11 : f32 to vector<8x128xf32>
    %15 = arith.maximumf %13, %14 : vector<8x128xf32>
    %16 = arith.truncf %15 : vector<8x128xf32> to vector<8x128xbf16>
    %c0_12 = arith.constant 0 : index
    %c0_13 = arith.constant 0 : index
    %17 = vector.load %arg6[%c0_12, %c0_13] : memref<128x128xbf16, #tpu.memory_space<vmem>>, vector<128x128xbf16>
    %cst_14 = arith.constant dense<0.000000e+00> : vector<8x128xf32>
    %18 = tpu.matmul %16, %17, %cst_14 {dimension_numbers = #tpu.dot_dimension_numbers<[1], [0], [0], [1], [0, 0, 1, 1], [], []>} : vector<8x128xbf16>, vector<128x128xbf16>, vector<8x128xf32> -> vector<8x128xf32>
    %c0_15 = arith.constant 0 : index
    %c0_16 = arith.constant 0 : index
    %19 = vector.load %arg7[%c0_15, %c0_16] : memref<1x128xf32, #tpu.memory_space<vmem>>, vector<1x128xf32>
    %20 = vector.broadcast %19 : vector<1x128xf32> to vector<8x128xf32>
    %21 = arith.addf %18, %20 : vector<8x128xf32>
    %22 = arith.truncf %21 : vector<8x128xf32> to vector<8x128xbf16>
    %c0_17 = arith.constant 0 : index
    %c0_18 = arith.constant 0 : index
    %23 = vector.load %arg8[%c0_17, %c0_18] : memref<8x128xbf16, #tpu.memory_space<vmem>>, vector<8x128xbf16>
    tpu.vector_store %arg8[%c0_17, %c0_18], %22 {strides = array<i32>} : memref<8x128xbf16, #tpu.memory_space<vmem>>, vector<8x128xbf16>,
    return
  }
  func.func @transform_0(%arg0: i32) -> (i32, i32) {
    %c0_i32 = arith.constant 0 : i32
    %c0_i32_0 = arith.constant 0 : i32
    return %arg0, %c0_i32 : i32, i32
  }
  func.func @transform_1(%arg0: i32) -> (i32, i32) {
    %c0_i32 = arith.constant 0 : i32
    %c0_i32_0 = arith.constant 0 : i32
    %c0_i32_1 = arith.constant 0 : i32
    return %c0_i32, %c0_i32_0 : i32, i32
  }
  func.func @transform_2(%arg0: i32) -> (i32, i32) {
    %c0_i32 = arith.constant 0 : i32
    %c0_i32_0 = arith.constant 0 : i32
    %c0_i32_1 = arith.constant 0 : i32
    return %c0_i32, %c0_i32_0 : i32, i32
  }
  func.func @transform_3(%arg0: i32) -> (i32, i32) {
    %c0_i32 = arith.constant 0 : i32
    %c0_i32_0 = arith.constant 0 : i32
    %c0_i32_1 = arith.constant 0 : i32
    return %c0_i32, %c0_i32_0 : i32, i32
  }
  func.func @transform_4(%arg0: i32) -> (i32, i32) {
    %c0_i32 = arith.constant 0 : i32
    %c0_i32_0 = arith.constant 0 : i32
    %c0_i32_1 = arith.constant 0 : i32
    return %c0_i32, %c0_i32_0 : i32, i32
  }
  func.func @transform_5(%arg0: i32) -> (i32, i32) {
    %c0_i32 = arith.constant 0 : i32
    %c0_i32_0 = arith.constant 0 : i32
    %c0_i32_1 = arith.constant 0 : i32
    return %c0_i32, %c0_i32_0 : i32, i32
  }
  func.func @transform_6(%arg0: i32) -> (i32, i32) {
    %c0_i32 = arith.constant 0 : i32
    %c0_i32_0 = arith.constant 0 : i32
    %c0_i32_1 = arith.constant 0 : i32
    return %c0_i32, %c0_i32_0 : i32, i32
  }
  func.func @transform_7(%arg0: i32) -> (i32, i32) {
    %c0_i32 = arith.constant 0 : i32
    %c0_i32_0 = arith.constant 0 : i32
    return %arg0, %c0_i32 : i32, i32
  }
}

</mosaic_0001>

<llo_original>
// kernel: qnetwork_forward.1
$region0: #{qnetwork_forward.1}
  #allocation0 [shape = 'u32[]', space=smem, size = 0x4, offset = 0x4, fixed_abs, tag = 'smem constant byte address 0x4 - core index']
  #allocation1 [shape = 'u32[144,128]{1,0:T(1,128)}', space=vmem, size = 0x12000, scoped, tag = 'internal scratch']
  %s0 = inlined_call_operand.hbm [shape: f32[8,8], index: 0, kind: input, shape index: {}]
  %s1 = inlined_call_operand.vmem [shape: f32[8,128], index: 1, kind: input, shape index: {}]
  %s2 = inlined_call_operand.vmem [shape: f32[1,128], index: 2, kind: input, shape index: {}]
  %s3 = inlined_call_operand.hbm [shape: bf16[128,128], index: 3, kind: input, shape index: {}]
  %s4 = inlined_call_operand.vmem [shape: f32[1,128], index: 4, kind: input, shape index: {}]
  %s5 = inlined_call_operand.hbm [shape: bf16[128,128], index: 5, kind: input, shape index: {}]
  %s6 = inlined_call_operand.vmem [shape: f32[1,128], index: 6, kind: input, shape index: {}]
  %s7 = inlined_call_operand.vmem [shape: bf16[8,128], index: 7, kind: output, shape index: {}]
  %s8 = sld [smem:[#allocation0]]
  $region50: #{qnetwork_forward.1} parent=0
    _
  %s10 = ssub.s32 1, %s8
  %s11 = scalar_select 0, %s10, %s8
  $region1: #{qnetwork_forward.1} parent=0
    #allocation2 [shape = 'u8[4096]{0}', space=vmem, size = 0x1000, scoped, tag = 'input window, operand 0, single buffered']
    #allocation3 [shape = 's32[1]{0}', space=sflag, size = 0x4, scoped, tag = 'scoped memory for qnetwork_forward.1']
    #allocation4 [shape = 'u8[32768]{0}', space=vmem, size = 0x8000, scoped, tag = 'input window, operand 3, single buffered']
    #allocation5 [shape = 's32[1]{0}', space=sflag, size = 0x4, scoped, tag = 'scoped memory for qnetwork_forward.1']
    #allocation6 [shape = 'u8[32768]{0}', space=vmem, size = 0x8000, scoped, tag = 'input window, operand 5, single buffered']
    %12 = vsyncpa [#allocation3], 0
    %13 = vsyncpa [#allocation5], 0
    // Predicated region
    $region2: #{qnetwork_forward.1} parent=1 // pred_check
      _
    $region3: #{qnetwork_forward.1} parent=1 // pred_check_branch
      %15 = sbr.rel (0) target = $region5
    $region4: #{qnetwork_forward.1} parent=1 // pred_region
      %s17 = ssub.s32 128, 128
      %18 = vsyncadd [#allocation3], %s17
      %s20 = sshll.u32 [#allocation2], 4
      %s21 = int_to_ptr.vmem [resolvable:$true] %s20
      %23 = dma.hbm_to_vmem [thread:$0]  %s0, 128, %s21, [#allocation3]
    $region5: #{qnetwork_forward.1} parent=1 // pred_fallthru
      _
    // Predicated region
    $region6: #{qnetwork_forward.1} parent=1 // pred_check
      _
    $region7: #{qnetwork_forward.1} parent=1 // pred_check_branch
      %25 = sbr.rel (0) target = $region9
    $region8: #{qnetwork_forward.1} parent=1 // pred_region
      _
    $region9: #{qnetwork_forward.1} parent=1 // pred_fallthru
      _
    // Predicated region
    $region10: #{qnetwork_forward.1} parent=1 // pred_check
      _
    $region11: #{qnetwork_forward.1} parent=1 // pred_check_branch
      %27 = sbr.rel (0) target = $region13
    $region12: #{qnetwork_forward.1} parent=1 // pred_region
      _
    $region13: #{qnetwork_forward.1} parent=1 // pred_fallthru
      _
    // Predicated region
    $region14: #{qnetwork_forward.1} parent=1 // pred_check
      _
    $region15: #{qnetwork_forward.1} parent=1 // pred_check_branch
      %29 = sbr.rel (0) target = $region17
    $region16: #{qnetwork_forward.1} parent=1 // pred_region
      %s31 = ssub.s32 1024, 1024
      %32 = vsyncadd [#allocation5], %s31
      %s33 = sshll.u32 [#allocation4], 4
      %s34 = int_to_ptr.vmem [resolvable:$true] %s33
      %39 = dma.hbm_to_vmem [thread:$0]  %s3, 1024, %s34, [#allocation5], 64, 64, 4
    $region17: #{qnetwork_forward.1} parent=1 // pred_fallthru
      _
    // Predicated region
    $region18: #{qnetwork_forward.1} parent=1 // pred_check
      _
    $region19: #{qnetwork_forward.1} parent=1 // pred_check_branch
      %41 = sbr.rel (0) target = $region21
    $region20: #{qnetwork_forward.1} parent=1 // pred_region
      _
    $region21: #{qnetwork_forward.1} parent=1 // pred_fallthru
      _
    // Predicated region
    $region22: #{qnetwork_forward.1} parent=1 // pred_check
      _
    $region23: #{qnetwork_forward.1} parent=1 // pred_check_branch
      %43 = sbr.rel (0) target = $region25
    $region24: #{qnetwork_forward.1} parent=1 // pred_region
      %s45 = ssub.s32 1024, 1024
      %46 = vsyncadd [#allocation5], %s45
      %s47 = sshll.u32 [#allocation6], 4
      %s48 = int_to_ptr.vmem [resolvable:$true] %s47
      %53 = dma.hbm_to_vmem [thread:$0]  %s5, 1024, %s48, [#allocation5], 64, 64, 4
    $region25: #{qnetwork_forward.1} parent=1 // pred_fallthru
      _
    // Predicated region
    $region26: #{qnetwork_forward.1} parent=1 // pred_check
      _
    $region27: #{qnetwork_forward.1} parent=1 // pred_check_branch
      %55 = sbr.rel (0) target = $region29
    $region28: #{qnetwork_forward.1} parent=1 // pred_region
      _
    $region29: #{qnetwork_forward.1} parent=1 // pred_fallthru
      _
    // Predicated region
    $region30: #{qnetwork_forward.1} parent=1 // pred_check
      _
    $region31: #{qnetwork_forward.1} parent=1 // pred_check_branch
      %57 = sbr.rel (0) target = $region33
    $region32: #{qnetwork_forward.1} parent=1 // pred_region
      %58 = dma.done [#allocation3], 128
    $region33: #{qnetwork_forward.1} parent=1 // pred_fallthru
      _
    // Predicated region
    $region34: #{qnetwork_forward.1} parent=1 // pred_check
      _
    $region35: #{qnetwork_forward.1} parent=1 // pred_check_branch
      %60 = sbr.rel (0) target = $region37
    $region36: #{qnetwork_forward.1} parent=1 // pred_region
      %61 = dma.done [#allocation5], 1024
    $region37: #{qnetwork_forward.1} parent=1 // pred_fallthru
      _
    // Predicated region
    $region38: #{qnetwork_forward.1} parent=1 // pred_check
      _
    $region39: #{qnetwork_forward.1} parent=1 // pred_check_branch
      %63 = sbr.rel (0) target = $region41
    $region40: #{qnetwork_forward.1} parent=1 // pred_region
      %64 = dma.done [#allocation5], 1024
    $region41: #{qnetwork_forward.1} parent=1 // pred_fallthru
      _
    %v66 = vld [vmem:[#allocation2] sm:$0xff]
    %v67 = vld [vmem:[%s1] sm:$0xff]
    %v68 = vld [vmem:[%s2] sm:$0x1]
    %v70 = vlaneseq
    %v71 = vshrl.u32 %v70, 7
    %v72 = vsub.s32 0, %v71
    %v73 = vrot.slane %v68, %v72
    %vm75 = vcmask 64512
    %v77 = vsel %vm75, %v66, 0
    %79 = vmatprep.subr.mxu0 0.0
    %80 = vmatpush1.msra.mxu0 %v67
    %81 = vmatprep.subr.mxu0 0.0
    %82 = vmatpush1.msra.mxu0 0.0
    %83 = vmatprep.subr.mxu0 0.0
    %84 = vmatpush1.msra.mxu0 0.0
    %85 = vmatprep.subr.mxu0 0.0
    %86 = vmatpush1.msra.mxu0 0.0
    %87 = vmatprep.subr.mxu0 0.0
    %88 = vmatpush1.msra.mxu0 0.0
    %89 = vmatprep.subr.mxu0 0.0
    %90 = vmatpush1.msra.mxu0 0.0
    %91 = vmatprep.subr.mxu0 0.0
    %92 = vmatpush1.msra.mxu0 0.0
    %93 = vmatprep.subr.mxu0 0.0
    %94 = vmatpush1.msra.mxu0 0.0
    %95 = vmatprep.subr.mxu0 0.0
    %96 = vmatpush1.msra.mxu0 0.0
    %97 = vmatprep.subr.mxu0 0.0
    %98 = vmatpush1.msra.mxu0 0.0
    %99 = vmatprep.subr.mxu0 0.0
    %100 = vmatpush1.msra.mxu0 0.0
    %101 = vmatprep.subr.mxu0 0.0
    %102 = vmatpush1.msra.mxu0 0.0
    %103 = vmatprep.subr.mxu0 0.0
    %104 = vmatpush1.msra.mxu0 0.0
    %105 = vmatprep.subr.mxu0 0.0
    %106 = vmatpush1.msra.mxu0 0.0
    %107 = vmatprep.subr.mxu0 0.0
    %108 = vmatpush1.msra.mxu0 0.0
    %109 = vmatprep.subr.mxu0 0.0
    %110 = vmatpush1.msra.mxu0 0.0
    %111 = vmatprep.subr.mxu0 0.0
    %112 = vmatpush1.msra.mxu0 0.0
    %113 = vmatprep.subr.mxu0 0.0
    %114 = vmatpush1.msra.mxu0 0.0
    %115 = vmatprep.subr.mxu0 0.0
    %116 = vmatpush1.msra.mxu0 0.0
    %117 = vmatprep.subr.mxu0 0.0
    %118 = vmatpush1.msra.mxu0 0.0
    %119 = vmatprep.subr.mxu0 0.0
    %120 = vmatpush1.msra.mxu0 0.0
    %121 = vmatprep.subr.mxu0 0.0
    %122 = vmatpush1.msra.mxu0 0.0
    %123 = vmatprep.subr.mxu0 0.0
    %124 = vmatpush1.msra.mxu0 0.0
    %125 = vmatprep.subr.mxu0 0.0
    %126 = vmatpush1.msra.mxu0 0.0
    %127 = vmatprep.subr.mxu0 0.0
    %128 = vmatpush1.msra.mxu0 0.0
    %129 = vmatprep.subr.mxu0 0.0
    %130 = vmatpush1.msra.mxu0 0.0
    %131 = vmatprep.subr.mxu0 0.0
    %132 = vmatpush1.msra.mxu0 0.0
    %133 = vmatprep.subr.mxu0 0.0
    %134 = vmatpush1.msra.mxu0 0.0
    %135 = vmatprep.subr.mxu0 0.0
    %136 = vmatpush1.msra.mxu0 0.0
    %137 = vmatprep.subr.mxu0 0.0
    %138 = vmatpush1.msra.mxu0 0.0
    %139 = vmatprep.subr.mxu0 0.0
    %140 = vmatpush1.msra.mxu0 0.0
    %141 = vmatprep.subr.mxu0 0.0
    %142 = vmatpush1.msra.mxu0 0.0
    %143 = vmatprep.mubr.f32.mxu0 0.0
    %144 = vmatmul.mubr.f32.gmra.mrb[0].mxu0 %v77
    %v145 = vpop.f32.mrb[0].mxu0
    %v146 = vadd.f32 %v73, %v145
    %v147 = vpop.f32.mrb[0].mxu0
    %148 = vdwg.mxu0
    %v149 = vmax.f32 %v146, 0.0
    %v150 = vpack.c.bf16 %v149, %v149
    %v151 = vld [vmem:[#allocation4] sm:$0xf]
    %v152 = vld [vmem:[#allocation4 + $0x4] sm:$0xf]
    %v153 = vld [vmem:[#allocation4 + $0x8] sm:$0xf]
    %v154 = vld [vmem:[#allocation4 + $0xc] sm:$0xf]
    %v155 = vld [vmem:[#allocation4 + $0x10] sm:$0xf]
    %v156 = vld [vmem:[#allocation4 + $0x14] sm:$0xf]
    %v157 = vld [vmem:[#allocation4 + $0x18] sm:$0xf]
    %v158 = vld [vmem:[#allocation4 + $0x1c] sm:$0xf]
    %v159 = vld [vmem:[#allocation4 + $0x20] sm:$0xf]
    %v160 = vld [vmem:[#allocation4 + $0x24] sm:$0xf]
    %v161 = vld [vmem:[#allocation4 + $0x28] sm:$0xf]
    %v162 = vld [vmem:[#allocation4 + $0x2c] sm:$0xf]
    %v163 = vld [vmem:[#allocation4 + $0x30] sm:$0xf]
    %v164 = vld [vmem:[#allocation4 + $0x34] sm:$0xf]
    %v165 = vld [vmem:[#allocation4 + $0x38] sm:$0xf]
    %v166 = vld [vmem:[#allocation4 + $0x3c] sm:$0xf]
    %v167 = vld [vmem:[%s4] sm:$0x1]
    %v169 = vlaneseq
    %v170 = vshrl.u32 %v169, 7
    %v171 = vsub.s32 0, %v170
    %v172 = vrot.slane %v167, %v171
    %v190 = vunpack.c.l.b16 %v151
    %v191 = vunpack.c.l.b16 %v152
    %v192 = vunpack.c.l.b16 %v153
    %v193 = vunpack.c.l.b16 %v154
    %v194 = vunpack.c.l.b16 %v155
    %v195 = vunpack.c.l.b16 %v156
    %v196 = vunpack.c.l.b16 %v157
    %v197 = vunpack.c.l.b16 %v158
    %v198 = vunpack.c.l.b16 %v159
    %v199 = vunpack.c.l.b16 %v160
    %v200 = vunpack.c.l.b16 %v161
    %v201 = vunpack.c.l.b16 %v162
    %v202 = vunpack.c.l.b16 %v163
    %v203 = vunpack.c.l.b16 %v164
    %v204 = vunpack.c.l.b16 %v165
    %v205 = vunpack.c.l.b16 %v166
    %v206 = vpack.c.b16 %v191, %v190
    %v207 = vpack.c.b16 %v193, %v192
    %v208 = vpack.c.b16 %v195, %v194
    %v209 = vpack.c.b16 %v197, %v196
    %v210 = vpack.c.b16 %v199, %v198
    %v211 = vpack.c.b16 %v201, %v200
    %v212 = vpack.c.b16 %v203, %v202
    %v213 = vpack.c.b16 %v205, %v204
    %222 = vmatprep.subr.bf16.mxu0 0
    %223 = vmatpush1.bf16.msra.mxu0 %v206
    %224 = vmatprep.subr.bf16.mxu0 0
    %225 = vmatpush1.bf16.msra.mxu0 %v207
    %226 = vmatprep.subr.bf16.mxu0 0
    %227 = vmatpush1.bf16.msra.mxu0 %v208
    %228 = vmatprep.subr.bf16.mxu0 0
    %229 = vmatpush1.bf16.msra.mxu0 %v209
    %230 = vmatprep.subr.bf16.mxu0 0
    %231 = vmatpush1.bf16.msra.mxu0 %v210
    %232 = vmatprep.subr.bf16.mxu0 0
    %233 = vmatpush1.bf16.msra.mxu0 %v211
    %234 = vmatprep.subr.bf16.mxu0 0
    %235 = vmatpush1.bf16.msra.mxu0 %v212
    %236 = vmatprep.subr.bf16.mxu0 0
    %237 = vmatpush1.bf16.msra.mxu0 %v213
    %238 = vmatprep.subr.bf16.mxu0 0
    %239 = vmatpush1.bf16.msra.mxu0 0
    %240 = vmatprep.subr.bf16.mxu0 0
    %241 = vmatpush1.bf16.msra.mxu0 0
    %242 = vmatprep.subr.bf16.mxu0 0
    %243 = vmatpush1.bf16.msra.mxu0 0
    %244 = vmatprep.subr.bf16.mxu0 0
    %245 = vmatpush1.bf16.msra.mxu0 0
    %246 = vmatprep.subr.bf16.mxu0 0
    %247 = vmatpush1.bf16.msra.mxu0 0
    %248 = vmatprep.subr.bf16.mxu0 0
    %249 = vmatpush1.bf16.msra.mxu0 0
    %250 = vmatprep.subr.bf16.mxu0 0
    %251 = vmatpush1.bf16.msra.mxu0 0
    %252 = vmatprep.subr.bf16.mxu0 0
    %253 = vmatpush1.bf16.msra.mxu0 0
    %254 = vmatprep.mubr.bf16.mxu0 0
    %255 = vmatmul.mubr.bf16.gmra.mrb[0].mxu0 %v150
    %v256 = vpop.f32.mrb[0].mxu0
    %v257 = vadd.f32 %v172, %v256
    %v258 = vpop.f32.mrb[0].mxu0
    %v259 = vpop.f32.mrb[0].mxu0
    %v260 = vpop.f32.mrb[0].mxu0
    %261 = vdwg.mxu0
    %v262 = vmax.f32 %v257, 0.0
    %v263 = vpack.c.bf16 %v262, %v262
    %v264 = vld [vmem:[#allocation6] sm:$0xf]
    %v265 = vld [vmem:[#allocation6 + $0x4] sm:$0xf]
    %v266 = vld [vmem:[#allocation6 + $0x8] sm:$0xf]
    %v267 = vld [vmem:[#allocation6 + $0xc] sm:$0xf]
    %v268 = vld [vmem:[#allocation6 + $0x10] sm:$0xf]
    %v269 = vld [vmem:[#allocation6 + $0x14] sm:$0xf]
    %v270 = vld [vmem:[#allocation6 + $0x18] sm:$0xf]
    %v271 = vld [vmem:[#allocation6 + $0x1c] sm:$0xf]
    %v272 = vld [vmem:[#allocation6 + $0x20] sm:$0xf]
    %v273 = vld [vmem:[#allocation6 + $0x24] sm:$0xf]
    %v274 = vld [vmem:[#allocation6 + $0x28] sm:$0xf]
    %v275 = vld [vmem:[#allocation6 + $0x2c] sm:$0xf]
    %v276 = vld [vmem:[#allocation6 + $0x30] sm:$0xf]
    %v277 = vld [vmem:[#allocation6 + $0x34] sm:$0xf]
    %v278 = vld [vmem:[#allocation6 + $0x38] sm:$0xf]
    %v279 = vld [vmem:[#allocation6 + $0x3c] sm:$0xf]
    %v280 = vld [vmem:[%s6] sm:$0x1]
    %v282 = vlaneseq
    %v283 = vshrl.u32 %v282, 7
    %v284 = vsub.s32 0, %v283
    %v285 = vrot.slane %v280, %v284
    %v303 = vunpack.c.l.b16 %v264
    %v304 = vunpack.c.l.b16 %v265
    %v305 = vunpack.c.l.b16 %v266
    %v306 = vunpack.c.l.b16 %v267
    %v307 = vunpack.c.l.b16 %v268
    %v308 = vunpack.c.l.b16 %v269
    %v309 = vunpack.c.l.b16 %v270
    %v310 = vunpack.c.l.b16 %v271
    %v311 = vunpack.c.l.b16 %v272
    %v312 = vunpack.c.l.b16 %v273
    %v313 = vunpack.c.l.b16 %v274
    %v314 = vunpack.c.l.b16 %v275
    %v315 = vunpack.c.l.b16 %v276
    %v316 = vunpack.c.l.b16 %v277
    %v317 = vunpack.c.l.b16 %v278
    %v318 = vunpack.c.l.b16 %v279
    %v319 = vpack.c.b16 %v304, %v303
    %v320 = vpack.c.b16 %v306, %v305
    %v321 = vpack.c.b16 %v308, %v307
    %v322 = vpack.c.b16 %v310, %v309
    %v323 = vpack.c.b16 %v312, %v311
    %v324 = vpack.c.b16 %v314, %v313
    %v325 = vpack.c.b16 %v316, %v315
    %v326 = vpack.c.b16 %v318, %v317
    %335 = vmatprep.subr.bf16.mxu0 0
    %336 = vmatpush1.bf16.msra.mxu0 %v319
    %337 = vmatprep.subr.bf16.mxu0 0
    %338 = vmatpush1.bf16.msra.mxu0 %v320
    %339 = vmatprep.subr.bf16.mxu0 0
    %340 = vmatpush1.bf16.msra.mxu0 %v321
    %341 = vmatprep.subr.bf16.mxu0 0
    %342 = vmatpush1.bf16.msra.mxu0 %v322
    %343 = vmatprep.subr.bf16.mxu0 0
    %344 = vmatpush1.bf16.msra.mxu0 %v323
    %345 = vmatprep.subr.bf16.mxu0 0
    %346 = vmatpush1.bf16.msra.mxu0 %v324
    %347 = vmatprep.subr.bf16.mxu0 0
    %348 = vmatpush1.bf16.msra.mxu0 %v325
    %349 = vmatprep.subr.bf16.mxu0 0
    %350 = vmatpush1.bf16.msra.mxu0 %v326
    %351 = vmatprep.subr.bf16.mxu0 0
    %352 = vmatpush1.bf16.msra.mxu0 0
    %353 = vmatprep.subr.bf16.mxu0 0
    %354 = vmatpush1.bf16.msra.mxu0 0
    %355 = vmatprep.subr.bf16.mxu0 0
    %356 = vmatpush1.bf16.msra.mxu0 0
    %357 = vmatprep.subr.bf16.mxu0 0
    %358 = vmatpush1.bf16.msra.mxu0 0
    %359 = vmatprep.subr.bf16.mxu0 0
    %360 = vmatpush1.bf16.msra.mxu0 0
    %361 = vmatprep.subr.bf16.mxu0 0
    %362 = vmatpush1.bf16.msra.mxu0 0
    %363 = vmatprep.subr.bf16.mxu0 0
    %364 = vmatpush1.bf16.msra.mxu0 0
    %365 = vmatprep.subr.bf16.mxu0 0
    %366 = vmatpush1.bf16.msra.mxu0 0
    %367 = vmatprep.mubr.bf16.mxu0 0
    %368 = vmatmul.mubr.bf16.gmra.mrb[0].mxu0 %v263
    %v369 = vpop.f32.mrb[0].mxu0
    %v370 = vadd.f32 %v285, %v369
    %v371 = vpop.f32.mrb[0].mxu0
    %v372 = vpop.f32.mrb[0].mxu0
    %v373 = vpop.f32.mrb[0].mxu0
    %374 = vdwg.mxu0
    %v375 = vpack.c.bf16 %v370, %v370
    %376 = vst [vmem:[%s7] sm:$0xf] %v375
    // Predicated region
    $region42: #{qnetwork_forward.1} parent=1 // pred_check
      _
    $region43: #{qnetwork_forward.1} parent=1 // pred_check_branch
      %378 = sbr.rel (0) target = $region45
    $region44: #{qnetwork_forward.1} parent=1 // pred_region
      _
    $region45: #{qnetwork_forward.1} parent=1 // pred_fallthru
      _
    // Predicated region
    $region46: #{qnetwork_forward.1} parent=1 // pred_check
      _
    $region47: #{qnetwork_forward.1} parent=1 // pred_check_branch
      %380 = sbr.rel (0) target = $region49
    $region48: #{qnetwork_forward.1} parent=1 // pred_region
      _
    $region49: #{qnetwork_forward.1} parent=1 // pred_fallthru
      _
    %381 = vsyncpa [#allocation3], 1
    %382 = vsyncpa [#allocation5], 1

</llo_original>
